<compile_context>
chip_gen: v7x
topology: tpu7x:2x2x1
jax: 0.10.0
libtpu: 0.0.40
codegen_flags: <defaults>
</compile_context>

<pallas_src>
import jax
import jax.numpy as jnp
from jax.experimental import pallas as pl
from jax.experimental.pallas import tpu as pltpu

_UNROLL = 8  # row-DMA descriptors issued per unrolled inner step


def _gather_direct_kernel(ids_ref, w_hbm, out_ref, dma_sem):
    """weight.dtype == out dtype: gather rows straight into the output tile."""
    # ids_ref: (N_pad,) int32 ids in SMEM (scalar prefetch, pre-clamped)
    # w_hbm:   (V, D) embedding table, HBM resident (no auto-DMA)
    # out_ref: (T, D) VMEM output tile (same dtype as the table)
    T = out_ref.shape[0]
    base = pl.program_id(0) * T
    sem = dma_sem.at[0]

    # Phase 1: put T independent row DMAs in flight (HBM -> output tile).
    # Partially unrolled so address math co-issues with descriptor pushes.
    @pl.loop(0, T // _UNROLL)
    def _(o):
        start = pl.multiple_of(o * _UNROLL, _UNROLL)
        for u in range(_UNROLL):
            t = start + u
            tok = ids_ref[base + t]                  # pre-clamped in wrapper
            pltpu.make_async_copy(
                w_hbm.at[pl.ds(tok, 1)],             # (1, D) row in HBM
                out_ref.at[pl.ds(t, 1)],             # (1, D) row of out tile
                sem,
            ).start()

    # Phase 2: one bulk wait.  DMA semaphores count bytes, so a single
    # (T, D)-sized wait is equivalent to T row-sized waits.  Only the byte
    # count and the semaphore matter, so the destination tile itself is used
    # as the (same-size, same-dtype) wait descriptor.
    pltpu.make_async_copy(out_ref, out_ref, sem).wait()


def _make_cast_kernel(n_chunks, rows_per_chunk):
    """weight.dtype != out dtype: gather into scratch, cast chunk-by-chunk."""

    def kernel(ids_ref, w_hbm, out_ref, rows_ref, dma_sem):
        # rows_ref: (T, D) VMEM scratch in the weight dtype (gather landing zone)
        # dma_sem:  (n_chunks,) DMA semaphores, one per chunk
        T = out_ref.shape[0]
        base = pl.program_id(0) * T

        # Phase 1: issue ALL row DMAs; rows of chunk c signal dma_sem[c].
        for c in range(n_chunks):                    # static
            c_base = c * rows_per_chunk

            @pl.loop(0, rows_per_chunk // _UNROLL)
            def _(o, c=c, c_base=c_base):
                start = c_base + pl.multiple_of(o * _UNROLL, _UNROLL)
                for u in range(_UNROLL):
                    t = start + u
                    tok = ids_ref[base + t]
                    pltpu.make_async_copy(
                        w_hbm.at[pl.ds(tok, 1)],
                        rows_ref.at[pl.ds(t, 1)],
                        dma_sem.at[c],
                    ).start()

        # Phase 2/3: per chunk, one bulk wait then cast+store, so the VPU
        # cast of chunk c overlaps the still-in-flight DMAs of chunks > c.
        for c in range(n_chunks):                    # static
            lo = c * rows_per_chunk
            chunk = rows_ref.at[pl.ds(lo, rows_per_chunk)]
            pltpu.make_async_copy(chunk, chunk, dma_sem.at[c]).wait()
            out_ref[pl.ds(lo, rows_per_chunk), :] = (
                rows_ref[pl.ds(lo, rows_per_chunk), :].astype(out_ref.dtype))

    return kernel


def _sublane_multiple(dt):
    # packed-sublane count: 8 for 32-bit, 16 for bf16/fp16, 32 for int8/fp8
    return max(8, 32 // jnp.dtype(dt).itemsize)


def _round_up(x, m):
    return ((x + m - 1) // m) * m


def token_embedding(ids, weight, *, dtype=jnp.float32, block_tokens=256):
    """Pallas TokenEmbedding forward.

    ids:    (B, S) integer token ids
    weight: (V, D) embedding table (any float dtype)
    returns (B, S, D) in `dtype`
    """
    B, S = ids.shape
    V, D = weight.shape
    N = B * S
    out_dt = jnp.dtype(dtype)
    w_dt = jnp.dtype(weight.dtype)
    cast_needed = out_dt != w_dt

    # Tokens per grid step: multiple of the packed-sublane count of every
    # dtype involved, sized so (2x double-buffered output tile + optional
    # cast scratch) stays within a modest VMEM budget (portable to v7x).
    base_mult = _sublane_multiple(out_dt)
    if cast_needed:
        base_mult = max(base_mult, _sublane_multiple(w_dt))
    per_token_bytes = D * (2 * out_dt.itemsize
                           + (w_dt.itemsize if cast_needed else 0))
    vmem_budget = 12 * 1024 * 1024
    t_budget = max(base_mult, vmem_budget // per_token_bytes)

    T = int(min(block_tokens, t_budget, _round_up(N, base_mult)))
    T = max(base_mult, (T // base_mult) * base_mult)
    G = (N + T - 1) // T
    N_pad = G * T

    # Hoisted OOB clamp (keeps behavior defined; done once, vectorized, so it
    # never sits on the per-token descriptor-issue path).  Tail padding uses
    # id 0 (valid); the extra rows are sliced off below.
    ids_flat = jnp.clip(ids.reshape(-1).astype(jnp.int32), 0, V - 1)
    if N_pad != N:
        ids_flat = jnp.pad(ids_flat, (0, N_pad - N))

    if cast_needed:
        n_chunks = 1
        for c in (4, 2):
            if T % (c * base_mult) == 0:
                n_chunks = c
                break
        kernel = _make_cast_kernel(n_chunks, T // n_chunks)
        scratch_shapes = [
            pltpu.VMEM((T, D), w_dt),                 # gather landing zone
            pltpu.SemaphoreType.DMA((n_chunks,)),     # per-chunk semaphores
        ]
    else:
        kernel = _gather_direct_kernel
        scratch_shapes = [pltpu.SemaphoreType.DMA((1,))]

    grid_spec = pltpu.PrefetchScalarGridSpec(
        num_scalar_prefetch=1,                        # ids -> SMEM, prefetched
        grid=(G,),
        in_specs=[
            pl.BlockSpec(memory_space=pl.ANY),        # weight stays in HBM
        ],
        out_specs=pl.BlockSpec((T, D), lambda i, ids_ref: (i, 0)),
        scratch_shapes=scratch_shapes,
    )

    out_flat = pl.pallas_call(
        kernel,
        out_shape=jax.ShapeDtypeStruct((N_pad, D), out_dt),
        grid_spec=grid_spec,
        compiler_params=pltpu.CompilerParams(
            dimension_semantics=("parallel",),        # megacore-shardable (v7x)
            vmem_limit_bytes=32 * 1024 * 1024),
    )(ids_flat, weight)

    return out_flat[:N].reshape(B, S, D)


if __name__ == "__main__":
    key = jax.random.PRNGKey(0)
    k_w, k_ids = jax.random.split(key)

    # Small synthetic shapes consistent with the module.
    vocab, hidden = 64, 32
    batch, seq = 2, 8

    weight = jax.random.normal(k_w, (vocab, hidden), dtype=jnp.float32)
    ids = jax.random.randint(k_ids, (batch, seq), 0, vocab, dtype=jnp.int32)

    # Direct (no-cast) path; block_tokens=8 forces 2 grid steps over 16 tokens.
    out = token_embedding(ids, weight, dtype=jnp.float32, block_tokens=8)
    out = jax.block_until_ready(out)
    ref = jnp.take(weight, ids, axis=0).astype(jnp.float32)
    assert out.shape == (batch, seq, hidden)
    assert out.dtype == jnp.float32
    assert jnp.allclose(out, ref, atol=1e-6), "mismatch vs reference lookup (f32)"

    # Cast path (module's dtype= argument), single tile.
    out_bf16 = token_embedding(ids, weight, dtype=jnp.bfloat16, block_tokens=256)
    out_bf16 = jax.block_until_ready(out_bf16)
    ref_bf16 = jnp.take(weight, ids, axis=0).astype(jnp.bfloat16)
    assert out_bf16.dtype == jnp.bfloat16
    assert jnp.allclose(out_bf16.astype(jnp.float32),
                        ref_bf16.astype(jnp.float32)), \
        "mismatch vs reference lookup (bf16)"

    print("KERNEL_OK")
</pallas_src>

<mosaic_0001>
module attributes {stable_mosaic.version = 11 : i64} {
  func.func @_gather_direct_kernel(%arg0: i32, %arg1: memref<16xi32, #tpu.memory_space<smem>>, %arg2: memref<64x32xf32, #tpu.memory_space<any>>, %arg3: memref<8x32xf32, #tpu.memory_space<vmem>>, %arg4: memref<1x!tpu.dma_semaphore, #tpu.memory_space<semaphore_mem>>) attributes {dimension_semantics = [#tpu.dimension_semantics<parallel>], iteration_bounds = array<i64: 2>, scalar_prefetch = 1 : i64, scratch_operands = 1 : i64, tpu.core_type = #tpu.core_type<tc>, window_params = [{}, {transform_indices = @transform_1, window_bounds = array<i64: 8, 32>}]} {
    %c8_i32 = arith.constant 8 : i32
    %0 = arith.muli %arg0, %c8_i32 : i32
    %c0_i32 = arith.constant 0 : i32
    %c0_i32_0 = arith.constant 0 : i32
    %c1_i32 = arith.constant 1 : i32
    %1 = arith.muli %c0_i32_0, %c1_i32 : i32
    %c0_i32_1 = arith.constant 0 : i32
    %2 = arith.addi %c0_i32_1, %1 : i32
    %c8_i32_2 = arith.constant 8 : i32
    %3 = arith.muli %2, %c8_i32_2 : i32
    %4 = tpu.assume_multiple %3, 8 : i32
    %c0_i32_3 = arith.constant 0 : i32
    %5 = arith.addi %4, %c0_i32_3 : i32
    %6 = arith.addi %0, %5 : i32
    %7 = arith.index_cast %6 : i32 to index
    %8 = memref.load %arg1[%7] : memref<16xi32, #tpu.memory_space<smem>>
    %c0_i32_4 = arith.constant 0 : i32
    %9 = tpu.memref_slice %arg2[%8, %c0_i32_4] : memref<64x32xf32, #tpu.memory_space<any>> -> memref<1x32xf32, #tpu.memory_space<any>>
    %c0_i32_5 = arith.constant 0 : i32
    %10 = tpu.memref_slice %arg3[%5, %c0_i32_5] : memref<8x32xf32, #tpu.memory_space<vmem>> -> memref<1x32xf32, #tpu.memory_space<vmem>>
    %11 = tpu.memref_slice %arg4[%c0_i32] : memref<1x!tpu.dma_semaphore, #tpu.memory_space<semaphore_mem>> -> memref<1x!tpu.dma_semaphore, #tpu.memory_space<semaphore_mem>>
    %12 = tpu.memref_squeeze %11 : memref<1x!tpu.dma_semaphore, #tpu.memory_space<semaphore_mem>> -> memref<!tpu.dma_semaphore, #tpu.memory_space<semaphore_mem>>
    tpu.enqueue_dma source(%9 : memref<1x32xf32, #tpu.memory_space<any>>) target(%10 : memref<1x32xf32, #tpu.memory_space<vmem>>) target_semaphore(%12 : memref<!tpu.dma_semaphore, #tpu.memory_space<semaphore_mem>>)
    %c1_i32_6 = arith.constant 1 : i32
    %13 = arith.addi %4, %c1_i32_6 : i32
    %14 = arith.addi %0, %13 : i32
    %15 = arith.index_cast %14 : i32 to index
    %16 = memref.load %arg1[%15] : memref<16xi32, #tpu.memory_space<smem>>
    %c0_i32_7 = arith.constant 0 : i32
    %17 = tpu.memref_slice %arg2[%16, %c0_i32_7] : memref<64x32xf32, #tpu.memory_space<any>> -> memref<1x32xf32, #tpu.memory_space<any>>
    %c0_i32_8 = arith.constant 0 : i32
    %18 = tpu.memref_slice %arg3[%13, %c0_i32_8] : memref<8x32xf32, #tpu.memory_space<vmem>> -> memref<1x32xf32, #tpu.memory_space<vmem>>
    %19 = tpu.memref_slice %arg4[%c0_i32] : memref<1x!tpu.dma_semaphore, #tpu.memory_space<semaphore_mem>> -> memref<1x!tpu.dma_semaphore, #tpu.memory_space<semaphore_mem>>
    %20 = tpu.memref_squeeze %19 : memref<1x!tpu.dma_semaphore, #tpu.memory_space<semaphore_mem>> -> memref<!tpu.dma_semaphore, #tpu.memory_space<semaphore_mem>>
    tpu.enqueue_dma source(%17 : memref<1x32xf32, #tpu.memory_space<any>>) target(%18 : memref<1x32xf32, #tpu.memory_space<vmem>>) target_semaphore(%20 : memref<!tpu.dma_semaphore, #tpu.memory_space<semaphore_mem>>)
    %c2_i32 = arith.constant 2 : i32
    %21 = arith.addi %4, %c2_i32 : i32
    %22 = arith.addi %0, %21 : i32
    %23 = arith.index_cast %22 : i32 to index
    %24 = memref.load %arg1[%23] : memref<16xi32, #tpu.memory_space<smem>>
    %c0_i32_9 = arith.constant 0 : i32
    %25 = tpu.memref_slice %arg2[%24, %c0_i32_9] : memref<64x32xf32, #tpu.memory_space<any>> -> memref<1x32xf32, #tpu.memory_space<any>>
    %c0_i32_10 = arith.constant 0 : i32
    %26 = tpu.memref_slice %arg3[%21, %c0_i32_10] : memref<8x32xf32, #tpu.memory_space<vmem>> -> memref<1x32xf32, #tpu.memory_space<vmem>>
    %27 = tpu.memref_slice %arg4[%c0_i32] : memref<1x!tpu.dma_semaphore, #tpu.memory_space<semaphore_mem>> -> memref<1x!tpu.dma_semaphore, #tpu.memory_space<semaphore_mem>>
    %28 = tpu.memref_squeeze %27 : memref<1x!tpu.dma_semaphore, #tpu.memory_space<semaphore_mem>> -> memref<!tpu.dma_semaphore, #tpu.memory_space<semaphore_mem>>
    tpu.enqueue_dma source(%25 : memref<1x32xf32, #tpu.memory_space<any>>) target(%26 : memref<1x32xf32, #tpu.memory_space<vmem>>) target_semaphore(%28 : memref<!tpu.dma_semaphore, #tpu.memory_space<semaphore_mem>>)
    %c3_i32 = arith.constant 3 : i32
    %29 = arith.addi %4, %c3_i32 : i32
    %30 = arith.addi %0, %29 : i32
    %31 = arith.index_cast %30 : i32 to index
    %32 = memref.load %arg1[%31] : memref<16xi32, #tpu.memory_space<smem>>
    %c0_i32_11 = arith.constant 0 : i32
    %33 = tpu.memref_slice %arg2[%32, %c0_i32_11] : memref<64x32xf32, #tpu.memory_space<any>> -> memref<1x32xf32, #tpu.memory_space<any>>
    %c0_i32_12 = arith.constant 0 : i32
    %34 = tpu.memref_slice %arg3[%29, %c0_i32_12] : memref<8x32xf32, #tpu.memory_space<vmem>> -> memref<1x32xf32, #tpu.memory_space<vmem>>
    %35 = tpu.memref_slice %arg4[%c0_i32] : memref<1x!tpu.dma_semaphore, #tpu.memory_space<semaphore_mem>> -> memref<1x!tpu.dma_semaphore, #tpu.memory_space<semaphore_mem>>
    %36 = tpu.memref_squeeze %35 : memref<1x!tpu.dma_semaphore, #tpu.memory_space<semaphore_mem>> -> memref<!tpu.dma_semaphore, #tpu.memory_space<semaphore_mem>>
    tpu.enqueue_dma source(%33 : memref<1x32xf32, #tpu.memory_space<any>>) target(%34 : memref<1x32xf32, #tpu.memory_space<vmem>>) target_semaphore(%36 : memref<!tpu.dma_semaphore, #tpu.memory_space<semaphore_mem>>)
    %c4_i32 = arith.constant 4 : i32
    %37 = arith.addi %4, %c4_i32 : i32
    %38 = arith.addi %0, %37 : i32
    %39 = arith.index_cast %38 : i32 to index
    %40 = memref.load %arg1[%39] : memref<16xi32, #tpu.memory_space<smem>>
    %c0_i32_13 = arith.constant 0 : i32
    %41 = tpu.memref_slice %arg2[%40, %c0_i32_13] : memref<64x32xf32, #tpu.memory_space<any>> -> memref<1x32xf32, #tpu.memory_space<any>>
    %c0_i32_14 = arith.constant 0 : i32
    %42 = tpu.memref_slice %arg3[%37, %c0_i32_14] : memref<8x32xf32, #tpu.memory_space<vmem>> -> memref<1x32xf32, #tpu.memory_space<vmem>>
    %43 = tpu.memref_slice %arg4[%c0_i32] : memref<1x!tpu.dma_semaphore, #tpu.memory_space<semaphore_mem>> -> memref<1x!tpu.dma_semaphore, #tpu.memory_space<semaphore_mem>>
    %44 = tpu.memref_squeeze %43 : memref<1x!tpu.dma_semaphore, #tpu.memory_space<semaphore_mem>> -> memref<!tpu.dma_semaphore, #tpu.memory_space<semaphore_mem>>
    tpu.enqueue_dma source(%41 : memref<1x32xf32, #tpu.memory_space<any>>) target(%42 : memref<1x32xf32, #tpu.memory_space<vmem>>) target_semaphore(%44 : memref<!tpu.dma_semaphore, #tpu.memory_space<semaphore_mem>>)
    %c5_i32 = arith.constant 5 : i32
    %45 = arith.addi %4, %c5_i32 : i32
    %46 = arith.addi %0, %45 : i32
    %47 = arith.index_cast %46 : i32 to index
    %48 = memref.load %arg1[%47] : memref<16xi32, #tpu.memory_space<smem>>
    %c0_i32_15 = arith.constant 0 : i32
    %49 = tpu.memref_slice %arg2[%48, %c0_i32_15] : memref<64x32xf32, #tpu.memory_space<any>> -> memref<1x32xf32, #tpu.memory_space<any>>
    %c0_i32_16 = arith.constant 0 : i32
    %50 = tpu.memref_slice %arg3[%45, %c0_i32_16] : memref<8x32xf32, #tpu.memory_space<vmem>> -> memref<1x32xf32, #tpu.memory_space<vmem>>
    %51 = tpu.memref_slice %arg4[%c0_i32] : memref<1x!tpu.dma_semaphore, #tpu.memory_space<semaphore_mem>> -> memref<1x!tpu.dma_semaphore, #tpu.memory_space<semaphore_mem>>
    %52 = tpu.memref_squeeze %51 : memref<1x!tpu.dma_semaphore, #tpu.memory_space<semaphore_mem>> -> memref<!tpu.dma_semaphore, #tpu.memory_space<semaphore_mem>>
    tpu.enqueue_dma source(%49 : memref<1x32xf32, #tpu.memory_space<any>>) target(%50 : memref<1x32xf32, #tpu.memory_space<vmem>>) target_semaphore(%52 : memref<!tpu.dma_semaphore, #tpu.memory_space<semaphore_mem>>)
    %c6_i32 = arith.constant 6 : i32
    %53 = arith.addi %4, %c6_i32 : i32
    %54 = arith.addi %0, %53 : i32
    %55 = arith.index_cast %54 : i32 to index
    %56 = memref.load %arg1[%55] : memref<16xi32, #tpu.memory_space<smem>>
    %c0_i32_17 = arith.constant 0 : i32
    %57 = tpu.memref_slice %arg2[%56, %c0_i32_17] : memref<64x32xf32, #tpu.memory_space<any>> -> memref<1x32xf32, #tpu.memory_space<any>>
    %c0_i32_18 = arith.constant 0 : i32
    %58 = tpu.memref_slice %arg3[%53, %c0_i32_18] : memref<8x32xf32, #tpu.memory_space<vmem>> -> memref<1x32xf32, #tpu.memory_space<vmem>>
    %59 = tpu.memref_slice %arg4[%c0_i32] : memref<1x!tpu.dma_semaphore, #tpu.memory_space<semaphore_mem>> -> memref<1x!tpu.dma_semaphore, #tpu.memory_space<semaphore_mem>>
    %60 = tpu.memref_squeeze %59 : memref<1x!tpu.dma_semaphore, #tpu.memory_space<semaphore_mem>> -> memref<!tpu.dma_semaphore, #tpu.memory_space<semaphore_mem>>
    tpu.enqueue_dma source(%57 : memref<1x32xf32, #tpu.memory_space<any>>) target(%58 : memref<1x32xf32, #tpu.memory_space<vmem>>) target_semaphore(%60 : memref<!tpu.dma_semaphore, #tpu.memory_space<semaphore_mem>>)
    %c7_i32 = arith.constant 7 : i32
    %61 = arith.addi %4, %c7_i32 : i32
    %62 = arith.addi %0, %61 : i32
    %63 = arith.index_cast %62 : i32 to index
    %64 = memref.load %arg1[%63] : memref<16xi32, #tpu.memory_space<smem>>
    %c0_i32_19 = arith.constant 0 : i32
    %65 = tpu.memref_slice %arg2[%64, %c0_i32_19] : memref<64x32xf32, #tpu.memory_space<any>> -> memref<1x32xf32, #tpu.memory_space<any>>
    %c0_i32_20 = arith.constant 0 : i32
    %66 = tpu.memref_slice %arg3[%61, %c0_i32_20] : memref<8x32xf32, #tpu.memory_space<vmem>> -> memref<1x32xf32, #tpu.memory_space<vmem>>
    %67 = tpu.memref_slice %arg4[%c0_i32] : memref<1x!tpu.dma_semaphore, #tpu.memory_space<semaphore_mem>> -> memref<1x!tpu.dma_semaphore, #tpu.memory_space<semaphore_mem>>
    %68 = tpu.memref_squeeze %67 : memref<1x!tpu.dma_semaphore, #tpu.memory_space<semaphore_mem>> -> memref<!tpu.dma_semaphore, #tpu.memory_space<semaphore_mem>>
    tpu.enqueue_dma source(%65 : memref<1x32xf32, #tpu.memory_space<any>>) target(%66 : memref<1x32xf32, #tpu.memory_space<vmem>>) target_semaphore(%68 : memref<!tpu.dma_semaphore, #tpu.memory_space<semaphore_mem>>)
    %c1_i32_21 = arith.constant 1 : i32
    %c0_i32_22 = arith.constant 0 : i32
    %69 = tpu.memref_slice %arg4[%c0_i32_22] : memref<1x!tpu.dma_semaphore, #tpu.memory_space<semaphore_mem>> -> memref<1x!tpu.dma_semaphore, #tpu.memory_space<semaphore_mem>>
    %70 = tpu.memref_squeeze %69 : memref<1x!tpu.dma_semaphore, #tpu.memory_space<semaphore_mem>> -> memref<!tpu.dma_semaphore, #tpu.memory_space<semaphore_mem>>
    tpu.wait_dma2 semaphore(%70 : memref<!tpu.dma_semaphore, #tpu.memory_space<semaphore_mem>>) src(%arg3 : memref<8x32xf32, #tpu.memory_space<vmem>>) dst(%arg3 : memref<8x32xf32, #tpu.memory_space<vmem>>)
    return
  }
  func.func @transform_1(%arg0: i32, %arg1: memref<16xi32, #tpu.memory_space<smem>>) -> (i32, i32) {
    %c0_i32 = arith.constant 0 : i32
    %c0_i32_0 = arith.constant 0 : i32
    return %arg0, %c0_i32 : i32, i32
  }
}

</mosaic_0001>

<llo_original>
// kernel: tpu_custom_call.1
$region0: #{tpu_custom_call.1}
  #allocation0 [shape = 'u32[]', space=smem, size = 0x4, offset = 0x4, fixed_abs, tag = 'smem constant byte address 0x4 - core index']
  #allocation1 [shape = 'u32[144,128]{1,0:T(1,128)}', space=vmem, size = 0x12000, scoped, tag = 'internal scratch']
  #allocation2 [shape = 's32[1]{0}', space=sflag, size = 0x4, scoped, tag = 'scratch operand']
  #allocation3 [shape = 's32[1]{0}', space=sflag, size = 0x4, scoped, tag = 'scoped memory for tpu_custom_call.1']
  #allocation4 [shape = 'u8[512]{0}', space=smem, size = 0x200, scoped, tag = 'prefetched SMEM operand 0']
  #allocation7 [shape = 's32[]', space=sflag, size = 0x4, offset = 0, fixed_abs, tag = 'sflag constant byte address 0x0 - dummy sync flag']
  #allocation8 [shape = 's32[]', space=sflag, size = 0x4, offset = 0, fixed_abs, tag = 'sflag constant byte address 0x0 - dummy sync flag']
  #allocation9 [shape = 's32[]', space=sflag, size = 0x4, offset = 0, fixed_abs, tag = 'sflag constant byte address 0x0 - dummy sync flag']
  #allocation10 [shape = 's32[]', space=sflag, size = 0x4, offset = 0, fixed_abs, tag = 'sflag constant byte address 0x0 - dummy sync flag']
  #allocation11 [shape = 's32[]', space=sflag, size = 0x4, offset = 0, fixed_abs, tag = 'sflag constant byte address 0x0 - dummy sync flag']
  #allocation12 [shape = 's32[]', space=sflag, size = 0x4, offset = 0, fixed_abs, tag = 'sflag constant byte address 0x0 - dummy sync flag']
  #allocation13 [shape = 's32[]', space=sflag, size = 0x4, offset = 0, fixed_abs, tag = 'sflag constant byte address 0x0 - dummy sync flag']
  #allocation14 [shape = 's32[]', space=sflag, size = 0x4, offset = 0, fixed_abs, tag = 'sflag constant byte address 0x0 - dummy sync flag']
  %s0 = inlined_call_operand.vmem [shape: s32[16], index: 0, kind: input, shape index: {}]
  %s1 = inlined_call_operand.vmem [shape: f32[64,32], index: 1, kind: input, shape index: {}]
  %s2 = inlined_call_operand.hbm [shape: f32[16,32], index: 2, kind: output, shape index: {}]
  %s3 = sld [smem:[#allocation0]]
  $region265: #{tpu_custom_call.1} parent=0
    _
  %s5 = ssub.s32 1, %s3
  %s6 = scalar_select 0, %s5, %s3
  %s7 = sshll.u32 %s0, 4
  %s8 = int_to_ptr.vmem [resolvable:$true] %s7
  %10 = dma.vmem_to_smem %s8, 16, [#allocation4], [#allocation3]
  %11 = dma.done [#allocation3], 16
  %12 = sfence
  $region1: #{tpu_custom_call.1} parent=0
    #allocation5 [shape = 'u8[8192]{0}', space=vmem, size = 0x2000, scoped, tag = 'output window, operand 0']
    #allocation6 [shape = 's32[2]{0}', space=sflag, size = 0x8, scoped, tag = 'scoped memory for tpu_custom_call.1']
    %13 = vsyncpa [#allocation6], 0
    %s14 = scalar_lea.sflag [#allocation6], 1
    %15 = vsyncpa %s14, 0
    loop: start=0, step=1, limit=3
    $region2: #{tpu_custom_call.1} parent=1 // loop_pre_header
      _
    $region3: #{tpu_custom_call.1} parent=1 // loop_header
      %s17 = sphi 0, %s21
      %p18 = scmp.ge.s32.totalorder %s17, 3
      %s26 = sphi 0, %s28
      %s29 = sphi 0, %s26
      %s39 = sphi 0, %s29
    $region4: #{tpu_custom_call.1} parent=1 // loop_header_branch
      %20 = sbr.rel (%p18) target = $region8
    $region5: #{tpu_custom_call.1} parent=1 // loop_body
      %s22 = ssub.s32 %s17, 1
      %s23 = sadd.s32 %s17, 1
      %s24 = ssub.s32 %s17, %s23
      %p25 = scmp.eq.s32.totalorder %s24, 0
      %s27 = sadd.s32 %s26, 1
      %s28 = scalar_select %p25, %s26, %s27
      %p30 = pneg %p25
      %p31 = scmp.eq.s32.totalorder %s17, 1
      %p32 = por %p30, %p31
      %p33 = scmp.ne.s32.totalorder %s26, %s29
      %p34 = scmp.eq.s32.totalorder %s17, 0
      %p35 = por %p33, %p34
      %p36 = scmp.ne.s32.totalorder %s26, %s29
      %p37 = scmp.eq.s32.totalorder %s22, 1
      %p38 = por %p36, %p37
      %p40 = scmp.ne.s32.totalorder %s29, %s39
      %p41 = scmp.eq.s32.totalorder %s22, 0
      %p42 = por %p40, %p41
      %p43 = scmp.lt.s32.totalorder %s17, 2
      // Predicated region
      $region9: #{tpu_custom_call.1} parent=5 // pred_check
        %p44 = pneg %p43
      $region10: #{tpu_custom_call.1} parent=5 // pred_check_branch
        %46 = sbr.rel (%p44) target = $region12
      $region11: #{tpu_custom_call.1} parent=5 // pred_region
        %p47 = pneg %p35
        %p48 = pneg %p32
        %s49 = sand.u32 %s26, 1
        %s50 = scalar_lea.sflag [#allocation6], %s49
        %s51 = sand.u32 %s26, 1
        %s52 = smul.addr %s51, 8
        %s53 = scalar_lea.vmem [#allocation5], %s52
        %s54 = smul.u32 %s17, 8
        %s55 = sadd.s32 %s54, 0
        %s56 = sld [smem:[#allocation4 + %s55]]
        %s57 = scalar_lea.vmem %s1, %s56
        %p59 = scmp.lt.u32.totalorder 1, 8
        %p60 = pneg %p59
        // Predicated region
        $region13: #{tpu_custom_call.1} parent=11 // pred_check
          _
        $region14: #{tpu_custom_call.1} parent=11 // pred_check_branch
          %62 = sbr.rel (%p59) target = $region16
        $region15: #{tpu_custom_call.1} parent=11 // pred_region
          %s77 = sand.u32 1, 7
          %p78 = scmp.eq.s32.totalorder %s77, 0
          %p79 = pneg %p78
          // Predicated region
          $region28: #{tpu_custom_call.1} parent=15 // pred_check
            _
          $region29: #{tpu_custom_call.1} parent=15 // pred_check_branch
            %81 = sbr.rel (%p78) target = $region31
          $region30: #{tpu_custom_call.1} parent=15 // pred_region
            %s82 = sand.u32 1, 7
            %s83 = ssub.s32 1, %s82
            %s84 = scalar_lea.vmem %s57, %s83
            %s85 = ssub.s32 1, %s82
            %s86 = scalar_lea.vmem %s53, %s85 [#allocation5]
            %s87 = sshllo.u32 0, %s82
            loop: start=0, step=1, limit=1
            $region32: #{tpu_custom_call.1} parent=30 // loop_pre_header
              _
            $region33: #{tpu_custom_call.1} parent=30 // loop_header
              %s89 = sphi 0, %s93
              %p90 = scmp.ge.s32.totalorder %s89, 1
              %s94 = sphi %s84, %s84
              %s95 = sphi %s86, %s86
            $region34: #{tpu_custom_call.1} parent=30 // loop_header_branch
              %92 = sbr.rel (%p90) target = $region38
            $region35: #{tpu_custom_call.1} parent=30 // loop_body
              %v96 = vld [vmem:[%s94] sm:%s87]
              %97 = vst [vmem:[%s95] sm:%s87] %v96
            $region36: #{tpu_custom_call.1} parent=30 // loop_footer
              %s93 = sadd.s32 1, %s89
            $region37: #{tpu_custom_call.1} parent=30 // loop_footer_branch
              %88 = sbr.rel target = $region33
            $region38: #{tpu_custom_call.1} parent=30 // loop_exit
              _
          $region31: #{tpu_custom_call.1} parent=15 // pred_fallthru
            _
        $region16: #{tpu_custom_call.1} parent=11 // pred_fallthru
          _
        // Predicated region
        $region17: #{tpu_custom_call.1} parent=11 // pred_check
          %p63 = pneg %p59
        $region18: #{tpu_custom_call.1} parent=11 // pred_check_branch
          %65 = sbr.rel (%p63) target = $region20
        $region19: #{tpu_custom_call.1} parent=11 // pred_region
          %s66 = sshllo.u32 0, 1
          loop: start=0, step=1, limit=1
          $region21: #{tpu_custom_call.1} parent=19 // loop_pre_header
            _
          $region22: #{tpu_custom_call.1} parent=19 // loop_header
            %s68 = sphi 0, %s72
            %p69 = scmp.ge.s32.totalorder %s68, 1
            %s73 = sphi %s57, %s57
            %s74 = sphi %s53, %s53
          $region23: #{tpu_custom_call.1} parent=19 // loop_header_branch
            %71 = sbr.rel (%p69) target = $region27
          $region24: #{tpu_custom_call.1} parent=19 // loop_body
            %v75 = vld [vmem:[%s73] sm:%s66]
            %76 = vst [vmem:[%s74] sm:%s66] %v75
          $region25: #{tpu_custom_call.1} parent=19 // loop_footer
            %s72 = sadd.s32 1, %s68
          $region26: #{tpu_custom_call.1} parent=19 // loop_footer_branch
            %67 = sbr.rel target = $region22
          $region27: #{tpu_custom_call.1} parent=19 // loop_exit
            _
        $region20: #{tpu_custom_call.1} parent=11 // pred_fallthru
          _
        // Predicated region
        $region39: #{tpu_custom_call.1} parent=11 // pred_check
          _
        $region40: #{tpu_custom_call.1} parent=11 // pred_check_branch
          %100 = sbr.rel (0) target = $region42
        $region41: #{tpu_custom_call.1} parent=11 // pred_region
          %101 = vsyncadd [#allocation2], 16
        $region42: #{tpu_custom_call.1} parent=11 // pred_fallthru
          _
        %s102 = sadd.s32 0, 1
        %s103 = sadd.s32 %s54, %s102
        %s104 = sld [smem:[#allocation4 + %s103]]
        %s105 = scalar_lea.vmem %s1, %s104
        %s106 = scalar_lea.vmem %s53, %s102 [#allocation5]
        %p108 = scmp.lt.u32.totalorder 1, 8
        %p109 = pneg %p108
        // Predicated region
        $region43: #{tpu_custom_call.1} parent=11 // pred_check
          _
        $region44: #{tpu_custom_call.1} parent=11 // pred_check_branch
          %111 = sbr.rel (%p108) target = $region46
        $region45: #{tpu_custom_call.1} parent=11 // pred_region
          %s126 = sand.u32 1, 7
          %p127 = scmp.eq.s32.totalorder %s126, 0
          %p128 = pneg %p127
          // Predicated region
          $region58: #{tpu_custom_call.1} parent=45 // pred_check
            _
          $region59: #{tpu_custom_call.1} parent=45 // pred_check_branch
            %130 = sbr.rel (%p127) target = $region61
          $region60: #{tpu_custom_call.1} parent=45 // pred_region
            %s131 = sand.u32 1, 7
            %s132 = ssub.s32 1, %s131
            %s133 = scalar_lea.vmem %s105, %s132
            %s134 = ssub.s32 1, %s131
            %s135 = scalar_lea.vmem %s106, %s134 [#allocation5]
            %s136 = sshllo.u32 0, %s131
            loop: start=0, step=1, limit=1
            $region62: #{tpu_custom_call.1} parent=60 // loop_pre_header
              _
            $region63: #{tpu_custom_call.1} parent=60 // loop_header
              %s138 = sphi 0, %s142
              %p139 = scmp.ge.s32.totalorder %s138, 1
              %s143 = sphi %s133, %s133
              %s144 = sphi %s135, %s135
            $region64: #{tpu_custom_call.1} parent=60 // loop_header_branch
              %141 = sbr.rel (%p139) target = $region68
            $region65: #{tpu_custom_call.1} parent=60 // loop_body
              %v145 = vld [vmem:[%s143] sm:%s136]
              %146 = vst [vmem:[%s144] sm:%s136] %v145
            $region66: #{tpu_custom_call.1} parent=60 // loop_footer
              %s142 = sadd.s32 1, %s138
            $region67: #{tpu_custom_call.1} parent=60 // loop_footer_branch
              %137 = sbr.rel target = $region63
            $region68: #{tpu_custom_call.1} parent=60 // loop_exit
              _
          $region61: #{tpu_custom_call.1} parent=45 // pred_fallthru
            _
        $region46: #{tpu_custom_call.1} parent=11 // pred_fallthru
          _
        // Predicated region
        $region47: #{tpu_custom_call.1} parent=11 // pred_check
          %p112 = pneg %p108
        $region48: #{tpu_custom_call.1} parent=11 // pred_check_branch
          %114 = sbr.rel (%p112) target = $region50
        $region49: #{tpu_custom_call.1} parent=11 // pred_region
          %s115 = sshllo.u32 0, 1
          loop: start=0, step=1, limit=1
          $region51: #{tpu_custom_call.1} parent=49 // loop_pre_header
            _
          $region52: #{tpu_custom_call.1} parent=49 // loop_header
            %s117 = sphi 0, %s121
            %p118 = scmp.ge.s32.totalorder %s117, 1
            %s122 = sphi %s105, %s105
            %s123 = sphi %s106, %s106
          $region53: #{tpu_custom_call.1} parent=49 // loop_header_branch
            %120 = sbr.rel (%p118) target = $region57
          $region54: #{tpu_custom_call.1} parent=49 // loop_body
            %v124 = vld [vmem:[%s122] sm:%s115]
            %125 = vst [vmem:[%s123] sm:%s115] %v124
          $region55: #{tpu_custom_call.1} parent=49 // loop_footer
            %s121 = sadd.s32 1, %s117
          $region56: #{tpu_custom_call.1} parent=49 // loop_footer_branch
            %116 = sbr.rel target = $region52
          $region57: #{tpu_custom_call.1} parent=49 // loop_exit
            _
        $region50: #{tpu_custom_call.1} parent=11 // pred_fallthru
          _
        // Predicated region
        $region69: #{tpu_custom_call.1} parent=11 // pred_check
          _
        $region70: #{tpu_custom_call.1} parent=11 // pred_check_branch
          %149 = sbr.rel (0) target = $region72
        $region71: #{tpu_custom_call.1} parent=11 // pred_region
          %150 = vsyncadd [#allocation2], 16
        $region72: #{tpu_custom_call.1} parent=11 // pred_fallthru
          _
        %s151 = sadd.s32 0, 2
        %s152 = sadd.s32 %s54, %s151
        %s153 = sld [smem:[#allocation4 + %s152]]
        %s154 = scalar_lea.vmem %s1, %s153
        %s155 = scalar_lea.vmem %s53, %s151 [#allocation5]
        %p157 = scmp.lt.u32.totalorder 1, 8
        %p158 = pneg %p157
        // Predicated region
        $region73: #{tpu_custom_call.1} parent=11 // pred_check
          _
        $region74: #{tpu_custom_call.1} parent=11 // pred_check_branch
          %160 = sbr.rel (%p157) target = $region76
        $region75: #{tpu_custom_call.1} parent=11 // pred_region
          %s175 = sand.u32 1, 7
          %p176 = scmp.eq.s32.totalorder %s175, 0
          %p177 = pneg %p176
          // Predicated region
          $region88: #{tpu_custom_call.1} parent=75 // pred_check
            _
          $region89: #{tpu_custom_call.1} parent=75 // pred_check_branch
            %179 = sbr.rel (%p176) target = $region91
          $region90: #{tpu_custom_call.1} parent=75 // pred_region
            %s180 = sand.u32 1, 7
            %s181 = ssub.s32 1, %s180
            %s182 = scalar_lea.vmem %s154, %s181
            %s183 = ssub.s32 1, %s180
            %s184 = scalar_lea.vmem %s155, %s183 [#allocation5]
            %s185 = sshllo.u32 0, %s180
            loop: start=0, step=1, limit=1
            $region92: #{tpu_custom_call.1} parent=90 // loop_pre_header
              _
            $region93: #{tpu_custom_call.1} parent=90 // loop_header
              %s187 = sphi 0, %s191
              %p188 = scmp.ge.s32.totalorder %s187, 1
              %s192 = sphi %s182, %s182
              %s193 = sphi %s184, %s184
            $region94: #{tpu_custom_call.1} parent=90 // loop_header_branch
              %190 = sbr.rel (%p188) target = $region98
            $region95: #{tpu_custom_call.1} parent=90 // loop_body
              %v194 = vld [vmem:[%s192] sm:%s185]
              %195 = vst [vmem:[%s193] sm:%s185] %v194
            $region96: #{tpu_custom_call.1} parent=90 // loop_footer
              %s191 = sadd.s32 1, %s187
            $region97: #{tpu_custom_call.1} parent=90 // loop_footer_branch
              %186 = sbr.rel target = $region93
            $region98: #{tpu_custom_call.1} parent=90 // loop_exit
              _
          $region91: #{tpu_custom_call.1} parent=75 // pred_fallthru
            _
        $region76: #{tpu_custom_call.1} parent=11 // pred_fallthru
          _
        // Predicated region
        $region77: #{tpu_custom_call.1} parent=11 // pred_check
          %p161 = pneg %p157
        $region78: #{tpu_custom_call.1} parent=11 // pred_check_branch
          %163 = sbr.rel (%p161) target = $region80
        $region79: #{tpu_custom_call.1} parent=11 // pred_region
          %s164 = sshllo.u32 0, 1
          loop: start=0, step=1, limit=1
          $region81: #{tpu_custom_call.1} parent=79 // loop_pre_header
            _
          $region82: #{tpu_custom_call.1} parent=79 // loop_header
            %s166 = sphi 0, %s170
            %p167 = scmp.ge.s32.totalorder %s166, 1
            %s171 = sphi %s154, %s154
            %s172 = sphi %s155, %s155
          $region83: #{tpu_custom_call.1} parent=79 // loop_header_branch
            %169 = sbr.rel (%p167) target = $region87
          $region84: #{tpu_custom_call.1} parent=79 // loop_body
            %v173 = vld [vmem:[%s171] sm:%s164]
            %174 = vst [vmem:[%s172] sm:%s164] %v173
          $region85: #{tpu_custom_call.1} parent=79 // loop_footer
            %s170 = sadd.s32 1, %s166
          $region86: #{tpu_custom_call.1} parent=79 // loop_footer_branch
            %165 = sbr.rel target = $region82
          $region87: #{tpu_custom_call.1} parent=79 // loop_exit
            _
        $region80: #{tpu_custom_call.1} parent=11 // pred_fallthru
          _
        // Predicated region
        $region99: #{tpu_custom_call.1} parent=11 // pred_check
          _
        $region100: #{tpu_custom_call.1} parent=11 // pred_check_branch
          %198 = sbr.rel (0) target = $region102
        $region101: #{tpu_custom_call.1} parent=11 // pred_region
          %199 = vsyncadd [#allocation2], 16
        $region102: #{tpu_custom_call.1} parent=11 // pred_fallthru
          _
        %s200 = sadd.s32 0, 3
        %s201 = sadd.s32 %s54, %s200
        %s202 = sld [smem:[#allocation4 + %s201]]
        %s203 = scalar_lea.vmem %s1, %s202
        %s204 = scalar_lea.vmem %s53, %s200 [#allocation5]
        %p206 = scmp.lt.u32.totalorder 1, 8
        %p207 = pneg %p206
        // Predicated region
        $region103: #{tpu_custom_call.1} parent=11 // pred_check
          _
        $region104: #{tpu_custom_call.1} parent=11 // pred_check_branch
          %209 = sbr.rel (%p206) target = $region106
        $region105: #{tpu_custom_call.1} parent=11 // pred_region
          %s224 = sand.u32 1, 7
          %p225 = scmp.eq.s32.totalorder %s224, 0
          %p226 = pneg %p225
          // Predicated region
          $region118: #{tpu_custom_call.1} parent=105 // pred_check
            _
          $region119: #{tpu_custom_call.1} parent=105 // pred_check_branch
            %228 = sbr.rel (%p225) target = $region121
          $region120: #{tpu_custom_call.1} parent=105 // pred_region
            %s229 = sand.u32 1, 7
            %s230 = ssub.s32 1, %s229
            %s231 = scalar_lea.vmem %s203, %s230
            %s232 = ssub.s32 1, %s229
            %s233 = scalar_lea.vmem %s204, %s232 [#allocation5]
            %s234 = sshllo.u32 0, %s229
            loop: start=0, step=1, limit=1
            $region122: #{tpu_custom_call.1} parent=120 // loop_pre_header
              _
            $region123: #{tpu_custom_call.1} parent=120 // loop_header
              %s236 = sphi 0, %s240
              %p237 = scmp.ge.s32.totalorder %s236, 1
              %s241 = sphi %s231, %s231
              %s242 = sphi %s233, %s233
            $region124: #{tpu_custom_call.1} parent=120 // loop_header_branch
              %239 = sbr.rel (%p237) target = $region128
            $region125: #{tpu_custom_call.1} parent=120 // loop_body
              %v243 = vld [vmem:[%s241] sm:%s234]
              %244 = vst [vmem:[%s242] sm:%s234] %v243
            $region126: #{tpu_custom_call.1} parent=120 // loop_footer
              %s240 = sadd.s32 1, %s236
            $region127: #{tpu_custom_call.1} parent=120 // loop_footer_branch
              %235 = sbr.rel target = $region123
            $region128: #{tpu_custom_call.1} parent=120 // loop_exit
              _
          $region121: #{tpu_custom_call.1} parent=105 // pred_fallthru
            _
        $region106: #{tpu_custom_call.1} parent=11 // pred_fallthru
          _
        // Predicated region
        $region107: #{tpu_custom_call.1} parent=11 // pred_check
          %p210 = pneg %p206
        $region108: #{tpu_custom_call.1} parent=11 // pred_check_branch
          %212 = sbr.rel (%p210) target = $region110
        $region109: #{tpu_custom_call.1} parent=11 // pred_region
          %s213 = sshllo.u32 0, 1
          loop: start=0, step=1, limit=1
          $region111: #{tpu_custom_call.1} parent=109 // loop_pre_header
            _
          $region112: #{tpu_custom_call.1} parent=109 // loop_header
            %s215 = sphi 0, %s219
            %p216 = scmp.ge.s32.totalorder %s215, 1
            %s220 = sphi %s203, %s203
            %s221 = sphi %s204, %s204
          $region113: #{tpu_custom_call.1} parent=109 // loop_header_branch
            %218 = sbr.rel (%p216) target = $region117
          $region114: #{tpu_custom_call.1} parent=109 // loop_body
            %v222 = vld [vmem:[%s220] sm:%s213]
            %223 = vst [vmem:[%s221] sm:%s213] %v222
          $region115: #{tpu_custom_call.1} parent=109 // loop_footer
            %s219 = sadd.s32 1, %s215
          $region116: #{tpu_custom_call.1} parent=109 // loop_footer_branch
            %214 = sbr.rel target = $region112
          $region117: #{tpu_custom_call.1} parent=109 // loop_exit
            _
        $region110: #{tpu_custom_call.1} parent=11 // pred_fallthru
          _
        // Predicated region
        $region129: #{tpu_custom_call.1} parent=11 // pred_check
          _
        $region130: #{tpu_custom_call.1} parent=11 // pred_check_branch
          %247 = sbr.rel (0) target = $region132
        $region131: #{tpu_custom_call.1} parent=11 // pred_region
          %248 = vsyncadd [#allocation2], 16
        $region132: #{tpu_custom_call.1} parent=11 // pred_fallthru
          _
        %s249 = sadd.s32 0, 4
        %s250 = sadd.s32 %s54, %s249
        %s251 = sld [smem:[#allocation4 + %s250]]
        %s252 = scalar_lea.vmem %s1, %s251
        %s253 = scalar_lea.vmem %s53, %s249 [#allocation5]
        %p255 = scmp.lt.u32.totalorder 1, 8
        %p256 = pneg %p255
        // Predicated region
        $region133: #{tpu_custom_call.1} parent=11 // pred_check
          _
        $region134: #{tpu_custom_call.1} parent=11 // pred_check_branch
          %258 = sbr.rel (%p255) target = $region136
        $region135: #{tpu_custom_call.1} parent=11 // pred_region
          %s273 = sand.u32 1, 7
          %p274 = scmp.eq.s32.totalorder %s273, 0
          %p275 = pneg %p274
          // Predicated region
          $region148: #{tpu_custom_call.1} parent=135 // pred_check
            _
          $region149: #{tpu_custom_call.1} parent=135 // pred_check_branch
            %277 = sbr.rel (%p274) target = $region151
          $region150: #{tpu_custom_call.1} parent=135 // pred_region
            %s278 = sand.u32 1, 7
            %s279 = ssub.s32 1, %s278
            %s280 = scalar_lea.vmem %s252, %s279
            %s281 = ssub.s32 1, %s278
            %s282 = scalar_lea.vmem %s253, %s281 [#allocation5]
            %s283 = sshllo.u32 0, %s278
            loop: start=0, step=1, limit=1
            $region152: #{tpu_custom_call.1} parent=150 // loop_pre_header
              _
            $region153: #{tpu_custom_call.1} parent=150 // loop_header
              %s285 = sphi 0, %s289
              %p286 = scmp.ge.s32.totalorder %s285, 1
              %s290 = sphi %s280, %s280
              %s291 = sphi %s282, %s282
            $region154: #{tpu_custom_call.1} parent=150 // loop_header_branch
              %288 = sbr.rel (%p286) target = $region158
            $region155: #{tpu_custom_call.1} parent=150 // loop_body
              %v292 = vld [vmem:[%s290] sm:%s283]
              %293 = vst [vmem:[%s291] sm:%s283] %v292
            $region156: #{tpu_custom_call.1} parent=150 // loop_footer
              %s289 = sadd.s32 1, %s285
            $region157: #{tpu_custom_call.1} parent=150 // loop_footer_branch
              %284 = sbr.rel target = $region153
            $region158: #{tpu_custom_call.1} parent=150 // loop_exit
              _
          $region151: #{tpu_custom_call.1} parent=135 // pred_fallthru
            _
        $region136: #{tpu_custom_call.1} parent=11 // pred_fallthru
          _
        // Predicated region
        $region137: #{tpu_custom_call.1} parent=11 // pred_check
          %p259 = pneg %p255
        $region138: #{tpu_custom_call.1} parent=11 // pred_check_branch
          %261 = sbr.rel (%p259) target = $region140
        $region139: #{tpu_custom_call.1} parent=11 // pred_region
          %s262 = sshllo.u32 0, 1
          loop: start=0, step=1, limit=1
          $region141: #{tpu_custom_call.1} parent=139 // loop_pre_header
            _
          $region142: #{tpu_custom_call.1} parent=139 // loop_header
            %s264 = sphi 0, %s268
            %p265 = scmp.ge.s32.totalorder %s264, 1
            %s269 = sphi %s252, %s252
            %s270 = sphi %s253, %s253
          $region143: #{tpu_custom_call.1} parent=139 // loop_header_branch
            %267 = sbr.rel (%p265) target = $region147
          $region144: #{tpu_custom_call.1} parent=139 // loop_body
            %v271 = vld [vmem:[%s269] sm:%s262]
            %272 = vst [vmem:[%s270] sm:%s262] %v271
          $region145: #{tpu_custom_call.1} parent=139 // loop_footer
            %s268 = sadd.s32 1, %s264
          $region146: #{tpu_custom_call.1} parent=139 // loop_footer_branch
            %263 = sbr.rel target = $region142
          $region147: #{tpu_custom_call.1} parent=139 // loop_exit
            _
        $region140: #{tpu_custom_call.1} parent=11 // pred_fallthru
          _
        // Predicated region
        $region159: #{tpu_custom_call.1} parent=11 // pred_check
          _
        $region160: #{tpu_custom_call.1} parent=11 // pred_check_branch
          %296 = sbr.rel (0) target = $region162
        $region161: #{tpu_custom_call.1} parent=11 // pred_region
          %297 = vsyncadd [#allocation2], 16
        $region162: #{tpu_custom_call.1} parent=11 // pred_fallthru
          _
        %s298 = sadd.s32 0, 5
        %s299 = sadd.s32 %s54, %s298
        %s300 = sld [smem:[#allocation4 + %s299]]
        %s301 = scalar_lea.vmem %s1, %s300
        %s302 = scalar_lea.vmem %s53, %s298 [#allocation5]
        %p304 = scmp.lt.u32.totalorder 1, 8
        %p305 = pneg %p304
        // Predicated region
        $region163: #{tpu_custom_call.1} parent=11 // pred_check
          _
        $region164: #{tpu_custom_call.1} parent=11 // pred_check_branch
          %307 = sbr.rel (%p304) target = $region166
        $region165: #{tpu_custom_call.1} parent=11 // pred_region
          %s322 = sand.u32 1, 7
          %p323 = scmp.eq.s32.totalorder %s322, 0
          %p324 = pneg %p323
          // Predicated region
          $region178: #{tpu_custom_call.1} parent=165 // pred_check
            _
          $region179: #{tpu_custom_call.1} parent=165 // pred_check_branch
            %326 = sbr.rel (%p323) target = $region181
          $region180: #{tpu_custom_call.1} parent=165 // pred_region
            %s327 = sand.u32 1, 7
            %s328 = ssub.s32 1, %s327
            %s329 = scalar_lea.vmem %s301, %s328
            %s330 = ssub.s32 1, %s327
            %s331 = scalar_lea.vmem %s302, %s330 [#allocation5]
            %s332 = sshllo.u32 0, %s327
            loop: start=0, step=1, limit=1
            $region182: #{tpu_custom_call.1} parent=180 // loop_pre_header
              _
            $region183: #{tpu_custom_call.1} parent=180 // loop_header
              %s334 = sphi 0, %s338
              %p335 = scmp.ge.s32.totalorder %s334, 1
              %s339 = sphi %s329, %s329
              %s340 = sphi %s331, %s331
            $region184: #{tpu_custom_call.1} parent=180 // loop_header_branch
              %337 = sbr.rel (%p335) target = $region188
            $region185: #{tpu_custom_call.1} parent=180 // loop_body
              %v341 = vld [vmem:[%s339] sm:%s332]
              %342 = vst [vmem:[%s340] sm:%s332] %v341
            $region186: #{tpu_custom_call.1} parent=180 // loop_footer
              %s338 = sadd.s32 1, %s334
            $region187: #{tpu_custom_call.1} parent=180 // loop_footer_branch
              %333 = sbr.rel target = $region183
            $region188: #{tpu_custom_call.1} parent=180 // loop_exit
              _
          $region181: #{tpu_custom_call.1} parent=165 // pred_fallthru
            _
        $region166: #{tpu_custom_call.1} parent=11 // pred_fallthru
          _
        // Predicated region
        $region167: #{tpu_custom_call.1} parent=11 // pred_check
          %p308 = pneg %p304
        $region168: #{tpu_custom_call.1} parent=11 // pred_check_branch
          %310 = sbr.rel (%p308) target = $region170
        $region169: #{tpu_custom_call.1} parent=11 // pred_region
          %s311 = sshllo.u32 0, 1
          loop: start=0, step=1, limit=1
          $region171: #{tpu_custom_call.1} parent=169 // loop_pre_header
            _
          $region172: #{tpu_custom_call.1} parent=169 // loop_header
            %s313 = sphi 0, %s317
            %p314 = scmp.ge.s32.totalorder %s313, 1
            %s318 = sphi %s301, %s301
            %s319 = sphi %s302, %s302
          $region173: #{tpu_custom_call.1} parent=169 // loop_header_branch
            %316 = sbr.rel (%p314) target = $region177
          $region174: #{tpu_custom_call.1} parent=169 // loop_body
            %v320 = vld [vmem:[%s318] sm:%s311]
            %321 = vst [vmem:[%s319] sm:%s311] %v320
          $region175: #{tpu_custom_call.1} parent=169 // loop_footer
            %s317 = sadd.s32 1, %s313
          $region176: #{tpu_custom_call.1} parent=169 // loop_footer_branch
            %312 = sbr.rel target = $region172
          $region177: #{tpu_custom_call.1} parent=169 // loop_exit
            _
        $region170: #{tpu_custom_call.1} parent=11 // pred_fallthru
          _
        // Predicated region
        $region189: #{tpu_custom_call.1} parent=11 // pred_check
          _
        $region190: #{tpu_custom_call.1} parent=11 // pred_check_branch
          %345 = sbr.rel (0) target = $region192
        $region191: #{tpu_custom_call.1} parent=11 // pred_region
          %346 = vsyncadd [#allocation2], 16
        $region192: #{tpu_custom_call.1} parent=11 // pred_fallthru
          _
        %s347 = sadd.s32 0, 6
        %s348 = sadd.s32 %s54, %s347
        %s349 = sld [smem:[#allocation4 + %s348]]
        %s350 = scalar_lea.vmem %s1, %s349
        %s351 = scalar_lea.vmem %s53, %s347 [#allocation5]
        %p353 = scmp.lt.u32.totalorder 1, 8
        %p354 = pneg %p353
        // Predicated region
        $region193: #{tpu_custom_call.1} parent=11 // pred_check
          _
        $region194: #{tpu_custom_call.1} parent=11 // pred_check_branch
          %356 = sbr.rel (%p353) target = $region196
        $region195: #{tpu_custom_call.1} parent=11 // pred_region
          %s371 = sand.u32 1, 7
          %p372 = scmp.eq.s32.totalorder %s371, 0
          %p373 = pneg %p372
          // Predicated region
          $region208: #{tpu_custom_call.1} parent=195 // pred_check
            _
          $region209: #{tpu_custom_call.1} parent=195 // pred_check_branch
            %375 = sbr.rel (%p372) target = $region211
          $region210: #{tpu_custom_call.1} parent=195 // pred_region
            %s376 = sand.u32 1, 7
            %s377 = ssub.s32 1, %s376
            %s378 = scalar_lea.vmem %s350, %s377
            %s379 = ssub.s32 1, %s376
            %s380 = scalar_lea.vmem %s351, %s379 [#allocation5]
            %s381 = sshllo.u32 0, %s376
            loop: start=0, step=1, limit=1
            $region212: #{tpu_custom_call.1} parent=210 // loop_pre_header
              _
            $region213: #{tpu_custom_call.1} parent=210 // loop_header
              %s383 = sphi 0, %s387
              %p384 = scmp.ge.s32.totalorder %s383, 1
              %s388 = sphi %s378, %s378
              %s389 = sphi %s380, %s380
            $region214: #{tpu_custom_call.1} parent=210 // loop_header_branch
              %386 = sbr.rel (%p384) target = $region218
            $region215: #{tpu_custom_call.1} parent=210 // loop_body
              %v390 = vld [vmem:[%s388] sm:%s381]
              %391 = vst [vmem:[%s389] sm:%s381] %v390
            $region216: #{tpu_custom_call.1} parent=210 // loop_footer
              %s387 = sadd.s32 1, %s383
            $region217: #{tpu_custom_call.1} parent=210 // loop_footer_branch
              %382 = sbr.rel target = $region213
            $region218: #{tpu_custom_call.1} parent=210 // loop_exit
              _
          $region211: #{tpu_custom_call.1} parent=195 // pred_fallthru
            _
        $region196: #{tpu_custom_call.1} parent=11 // pred_fallthru
          _
        // Predicated region
        $region197: #{tpu_custom_call.1} parent=11 // pred_check
          %p357 = pneg %p353
        $region198: #{tpu_custom_call.1} parent=11 // pred_check_branch
          %359 = sbr.rel (%p357) target = $region200
        $region199: #{tpu_custom_call.1} parent=11 // pred_region
          %s360 = sshllo.u32 0, 1
          loop: start=0, step=1, limit=1
          $region201: #{tpu_custom_call.1} parent=199 // loop_pre_header
            _
          $region202: #{tpu_custom_call.1} parent=199 // loop_header
            %s362 = sphi 0, %s366
            %p363 = scmp.ge.s32.totalorder %s362, 1
            %s367 = sphi %s350, %s350
            %s368 = sphi %s351, %s351
          $region203: #{tpu_custom_call.1} parent=199 // loop_header_branch
            %365 = sbr.rel (%p363) target = $region207
          $region204: #{tpu_custom_call.1} parent=199 // loop_body
            %v369 = vld [vmem:[%s367] sm:%s360]
            %370 = vst [vmem:[%s368] sm:%s360] %v369
          $region205: #{tpu_custom_call.1} parent=199 // loop_footer
            %s366 = sadd.s32 1, %s362
          $region206: #{tpu_custom_call.1} parent=199 // loop_footer_branch
            %361 = sbr.rel target = $region202
          $region207: #{tpu_custom_call.1} parent=199 // loop_exit
            _
        $region200: #{tpu_custom_call.1} parent=11 // pred_fallthru
          _
        // Predicated region
        $region219: #{tpu_custom_call.1} parent=11 // pred_check
          _
        $region220: #{tpu_custom_call.1} parent=11 // pred_check_branch
          %394 = sbr.rel (0) target = $region222
        $region221: #{tpu_custom_call.1} parent=11 // pred_region
          %395 = vsyncadd [#allocation2], 16
        $region222: #{tpu_custom_call.1} parent=11 // pred_fallthru
          _
        %s396 = sadd.s32 0, 7
        %s397 = sadd.s32 %s54, %s396
        %s398 = sld [smem:[#allocation4 + %s397]]
        %s399 = scalar_lea.vmem %s1, %s398
        %s400 = scalar_lea.vmem %s53, %s396 [#allocation5]
        %p402 = scmp.lt.u32.totalorder 1, 8
        %p403 = pneg %p402
        // Predicated region
        $region223: #{tpu_custom_call.1} parent=11 // pred_check
          _
        $region224: #{tpu_custom_call.1} parent=11 // pred_check_branch
          %405 = sbr.rel (%p402) target = $region226
        $region225: #{tpu_custom_call.1} parent=11 // pred_region
          %s420 = sand.u32 1, 7
          %p421 = scmp.eq.s32.totalorder %s420, 0
          %p422 = pneg %p421
          // Predicated region
          $region238: #{tpu_custom_call.1} parent=225 // pred_check
            _
          $region239: #{tpu_custom_call.1} parent=225 // pred_check_branch
            %424 = sbr.rel (%p421) target = $region241
          $region240: #{tpu_custom_call.1} parent=225 // pred_region
            %s425 = sand.u32 1, 7
            %s426 = ssub.s32 1, %s425
            %s427 = scalar_lea.vmem %s399, %s426
            %s428 = ssub.s32 1, %s425
            %s429 = scalar_lea.vmem %s400, %s428 [#allocation5]
            %s430 = sshllo.u32 0, %s425
            loop: start=0, step=1, limit=1
            $region242: #{tpu_custom_call.1} parent=240 // loop_pre_header
              _
            $region243: #{tpu_custom_call.1} parent=240 // loop_header
              %s432 = sphi 0, %s436
              %p433 = scmp.ge.s32.totalorder %s432, 1
              %s437 = sphi %s427, %s427
              %s438 = sphi %s429, %s429
            $region244: #{tpu_custom_call.1} parent=240 // loop_header_branch
              %435 = sbr.rel (%p433) target = $region248
            $region245: #{tpu_custom_call.1} parent=240 // loop_body
              %v439 = vld [vmem:[%s437] sm:%s430]
              %440 = vst [vmem:[%s438] sm:%s430] %v439
            $region246: #{tpu_custom_call.1} parent=240 // loop_footer
              %s436 = sadd.s32 1, %s432
            $region247: #{tpu_custom_call.1} parent=240 // loop_footer_branch
              %431 = sbr.rel target = $region243
            $region248: #{tpu_custom_call.1} parent=240 // loop_exit
              _
          $region241: #{tpu_custom_call.1} parent=225 // pred_fallthru
            _
        $region226: #{tpu_custom_call.1} parent=11 // pred_fallthru
          _
        // Predicated region
        $region227: #{tpu_custom_call.1} parent=11 // pred_check
          %p406 = pneg %p402
        $region228: #{tpu_custom_call.1} parent=11 // pred_check_branch
          %408 = sbr.rel (%p406) target = $region230
        $region229: #{tpu_custom_call.1} parent=11 // pred_region
          %s409 = sshllo.u32 0, 1
          loop: start=0, step=1, limit=1
          $region231: #{tpu_custom_call.1} parent=229 // loop_pre_header
            _
          $region232: #{tpu_custom_call.1} parent=229 // loop_header
            %s411 = sphi 0, %s415
            %p412 = scmp.ge.s32.totalorder %s411, 1
            %s416 = sphi %s399, %s399
            %s417 = sphi %s400, %s400
          $region233: #{tpu_custom_call.1} parent=229 // loop_header_branch
            %414 = sbr.rel (%p412) target = $region237
          $region234: #{tpu_custom_call.1} parent=229 // loop_body
            %v418 = vld [vmem:[%s416] sm:%s409]
            %419 = vst [vmem:[%s417] sm:%s409] %v418
          $region235: #{tpu_custom_call.1} parent=229 // loop_footer
            %s415 = sadd.s32 1, %s411
          $region236: #{tpu_custom_call.1} parent=229 // loop_footer_branch
            %410 = sbr.rel target = $region232
          $region237: #{tpu_custom_call.1} parent=229 // loop_exit
            _
        $region230: #{tpu_custom_call.1} parent=11 // pred_fallthru
          _
        // Predicated region
        $region249: #{tpu_custom_call.1} parent=11 // pred_check
          _
        $region250: #{tpu_custom_call.1} parent=11 // pred_check_branch
          %443 = sbr.rel (0) target = $region252
        $region251: #{tpu_custom_call.1} parent=11 // pred_region
          %444 = vsyncadd [#allocation2], 16
        $region252: #{tpu_custom_call.1} parent=11 // pred_fallthru
          _
        %s445 = smul.u32 8, 1
        %s446 = sshll.u32 %s445, 4
        %447 = dma.done [#allocation2], %s446
        %s448 = sand.u32 %s26, 1
        %s449 = scalar_lea.sflag [#allocation6], %s448
        %s450 = sand.u32 %s26, 1
        %s451 = smul.addr %s450, 8
        %s452 = scalar_lea.vmem [#allocation5], %s451
        // Predicated region
        $region253: #{tpu_custom_call.1} parent=11 // pred_check
          %p453 = pneg %p32
        $region254: #{tpu_custom_call.1} parent=11 // pred_check_branch
          %455 = sbr.rel (%p453) target = $region256
        $region255: #{tpu_custom_call.1} parent=11 // pred_region
          %s457 = ssub.s32 128, 128
          %458 = vsyncadd %s449, %s457
          %s459 = smul.addr %s17, 128
          %s460 = scalar_lea.hbm %s2, %s459
          %s462 = sshll.u32 %s452, 4
          %s463 = int_to_ptr.vmem [resolvable:$true] %s462
          %465 = dma.vmem_to_hbm [thread:$0]  %s463, 128, %s460, %s449
        $region256: #{tpu_custom_call.1} parent=11 // pred_fallthru
          _
      $region12: #{tpu_custom_call.1} parent=5 // pred_fallthru
        _
      %p466 = scmp.le.s32.totalorder 1, %s17
      // Predicated region
      $region257: #{tpu_custom_call.1} parent=5 // pred_check
        %p467 = pneg %p466
      $region258: #{tpu_custom_call.1} parent=5 // pred_check_branch
        %469 = sbr.rel (%p467) target = $region260
      $region259: #{tpu_custom_call.1} parent=5 // pred_region
        %s470 = ssub.s32 %s17, 1
        // Predicated region
        $region261: #{tpu_custom_call.1} parent=259 // pred_check
          %p471 = pneg %p38
        $region262: #{tpu_custom_call.1} parent=259 // pred_check_branch
          %473 = sbr.rel (%p471) target = $region264
        $region263: #{tpu_custom_call.1} parent=259 // pred_region
          %s474 = sand.u32 %s29, 1
          %s475 = scalar_lea.sflag [#allocation6], %s474
          %s476 = sand.u32 %s29, 1
          %s477 = smul.addr %s476, 8
          %s478 = scalar_lea.vmem [#allocation5], %s477
          %479 = dma.done %s475, 128
        $region264: #{tpu_custom_call.1} parent=259 // pred_fallthru
          _
      $region260: #{tpu_custom_call.1} parent=5 // pred_fallthru
        _
    $region6: #{tpu_custom_call.1} parent=1 // loop_footer
      %s21 = sadd.s32 1, %s17
    $region7: #{tpu_custom_call.1} parent=1 // loop_footer_branch
      %16 = sbr.rel target = $region3
    $region8: #{tpu_custom_call.1} parent=1 // loop_exit
      _
    %480 = vsyncpa [#allocation6], 1
    %s481 = scalar_lea.sflag [#allocation6], 1
    %482 = vsyncpa %s481, 1
  %483 = vsyncmov [#allocation2]
  %s484 = vpop.sfrf %483
  %p485 = scmp.eq.s32.totalorder %s484, 0
  %p486 = pneg %p485
  %488 = shalt.err (%p486)

</llo_original>
